<compile_context>
chip_gen: v7x
topology: tpu7x:2x2x1
jax: 0.10.0
libtpu: 0.0.40
codegen_flags: <defaults>
</compile_context>

<pallas_src>
import jax
import jax.numpy as jnp
from jax.experimental import pallas as pl
from jax.experimental.pallas import tpu as pltpu

_MIB = 1024 * 1024
_TARGET_TILE_BYTES = 8 * _MIB   # target HBM bytes of x per grid step
_VMEM_BUDGET = 36 * _MIB        # double-buffered x + mask + out tiles (v7x-safe)


def _cdiv(a, b):
    return -(-a // b)


def _round_up(a, b):
    return _cdiv(a, b) * b


# ----------------------------- kernels --------------------------------------

def _softmax_kernel(x_ref, o_ref):
    x = x_ref[...].astype(jnp.float32)
    x_max = jnp.max(x, axis=-1, keepdims=True)
    x_exp = jnp.exp(x - x_max)
    denom = jnp.sum(x_exp, axis=-1, keepdims=True)
    o_ref[...] = (x_exp / denom).astype(o_ref.dtype)


def _masked_softmax_kernel(x_ref, m_ref, o_ref):
    x = x_ref[...].astype(jnp.float32)
    valid = m_ref[...] != 0                    # binary mask: nonzero == keep
    x_masked = jnp.where(valid, x, -jnp.inf)   # masked entries never win max
    x_max = jnp.max(x_masked, axis=-1, keepdims=True)
    x_exp = jnp.exp(x_masked - x_max)          # masked entries -> exactly 0
    denom = jnp.sum(x_exp, axis=-1, keepdims=True)
    o_ref[...] = (x_exp / denom).astype(o_ref.dtype)


# ----------------------------- tiling ---------------------------------------

def _pick_tiling(batch, max_rows, gran):
    """Rows-per-tile and grid length for the batch (sublane) axis.

    Prefers (a) >=4 and an even number of grid steps when the batch allows
    (keeps both v7x TensorCores busy with overlapped DMA), then (b) an even
    step count, then (c) the largest tile (fewer per-step overheads).
    """
    if batch <= gran:
        return batch, 1
    ideal = max(gran, (max_rows // gran) * gran)
    ideal = min(ideal, _round_up(batch, gran))
    cands = {ideal}
    for g in (2, 4, 6, 8, 12, 16):
        cands.add(min(ideal, max(gran, _round_up(_cdiv(batch, g), gran))))

    def score(t):
        g = _cdiv(batch, t)
        return (g >= 4 and g % 2 == 0, g % 2 == 0 or g == 1, t)

    tile = max(cands, key=score)
    grid = _cdiv(batch, tile)
    if grid == 1:
        tile = batch   # full-dim block is always layout-legal
    return tile, grid


# ----------------------------- wrapper --------------------------------------

def masked_softmax(x, mask=None):
    """Pallas TPU implementation of MaskedSoftmax.forward.

    x:    [batch, num_items] float array.
    mask: optional [batch, num_items] binary mask (any dtype; nonzero == keep).
    """
    assert x.ndim == 2, "expected [batch, num_items]"
    if mask is not None:
        assert mask.shape == x.shape, "mask must match x shape"
    B, N = x.shape
    out_dtype = x.dtype

    n_pad = _round_up(N, 128)  # VMEM lane padding of the last dim
    mask_item = 0 if mask is None else max(1, mask.dtype.itemsize)
    io_bytes = 2 * x.dtype.itemsize + mask_item

    # Sublane granularity: keep narrow mask dtypes on their native tiling.
    gran = 8
    if mask is not None and mask.dtype.itemsize < 4:
        gran = max(gran, 32 // mask.dtype.itemsize)

    rows_bw = _TARGET_TILE_BYTES // max(1, N * x.dtype.itemsize)
    rows_vmem = _VMEM_BUDGET // max(1, 2 * n_pad * io_bytes)
    max_rows = max(gran, min(rows_bw, rows_vmem))

    tile, grid = _pick_tiling(B, max_rows, gran)

    footprint = 2 * tile * n_pad * io_bytes      # double-buffered VMEM tiles
    vmem_limit = int(min(max(footprint + 8 * _MIB, 32 * _MIB), 48 * _MIB))
    if footprint + 8 * _MIB > 48 * _MIB:
        # TODO(synk): extremely wide rows (N ~ >100K) need a streaming two-pass
        # reduction over N; for now just declare the larger VMEM need.
        vmem_limit = int(footprint + 8 * _MIB)

    idx = lambda i: (i, 0)
    in_specs = [pl.BlockSpec((tile, N), idx)]
    args = [x]
    if mask is not None:
        in_specs.append(pl.BlockSpec((tile, N), idx))
        args.append(mask)
        kernel = _masked_softmax_kernel
    else:
        kernel = _softmax_kernel

    return pl.pallas_call(
        kernel,
        out_shape=jax.ShapeDtypeStruct((B, N), out_dtype),
        grid_spec=pltpu.PrefetchScalarGridSpec(
            num_scalar_prefetch=0,
            grid=(grid,),
            in_specs=in_specs,
            out_specs=pl.BlockSpec((tile, N), idx),
        ),
        compiler_params=pltpu.CompilerParams(
            dimension_semantics=("parallel",),
            vmem_limit_bytes=vmem_limit,
        ),
    )(*args)


# ----------------------------- reference & test ------------------------------

def _reference(x, mask=None):
    # Faithful pure-JAX port of the PyTorch forward.
    if mask is not None:
        m = mask.astype(jnp.float32)
        x_masked = x * m + (1.0 - 1.0 / m)
    else:
        x_masked = x
    x_max = jnp.max(x_masked, axis=1, keepdims=True)
    x_exp = jnp.exp(x - x_max)
    if mask is not None:
        x_exp = x_exp * m
    return x_exp / jnp.sum(x_exp, axis=1, keepdims=True)


if __name__ == "__main__":
    key = jax.random.PRNGKey(0)
    k1, k2, k3, k4 = jax.random.split(key, 4)

    # DRMM-style small case: [batch, num_items].
    B1, N1 = 8, 16
    x1 = jax.random.normal(k1, (B1, N1), dtype=jnp.float32)
    m1 = (jax.random.uniform(k2, (B1, N1)) > 0.3).astype(jnp.int8)
    m1 = m1.at[:, 0].set(1)  # at least one valid item per row (avoid NaN rows)

    # Wider case exercising the multi-step grid path.
    B2, N2 = 48, 256
    x2 = jax.random.normal(k3, (B2, N2), dtype=jnp.float32)
    m2 = (jax.random.uniform(k4, (B2, N2)) > 0.3).astype(jnp.int8)
    m2 = m2.at[:, 0].set(1)

    cases = ((x1, m1), (x2, m2))
    results = [(masked_softmax(x, m), masked_softmax(x)) for x, m in cases]
    jax.block_until_ready(results)

    for (x, m), (got_masked, got_unmasked) in zip(cases, results):
        ref_masked = _reference(x, m)
        ref_unmasked = _reference(x)
        assert jnp.allclose(got_masked, ref_masked, atol=1e-5, rtol=1e-5), \
            "masked softmax mismatch"
        assert jnp.allclose(got_unmasked, ref_unmasked, atol=1e-5, rtol=1e-5), \
            "unmasked softmax mismatch"
        assert jnp.allclose(got_masked.sum(axis=1), 1.0, atol=1e-4)
        assert jnp.allclose(got_unmasked.sum(axis=1), 1.0, atol=1e-4)

    print("KERNEL_OK")
</pallas_src>

<mosaic_0001>
module attributes {stable_mosaic.version = 11 : i64} {
  func.func @_masked_softmax_kernel(%arg0: i32, %arg1: memref<8x16xf32, #tpu.memory_space<vmem>>, %arg2: memref<8x16xi8, #tpu.memory_space<vmem>>, %arg3: memref<8x16xf32, #tpu.memory_space<vmem>>) attributes {dimension_semantics = [#tpu.dimension_semantics<parallel>], iteration_bounds = array<i64: 1>, scalar_prefetch = 0 : i64, scratch_operands = 0 : i64, tpu.core_type = #tpu.core_type<tc>, window_params = [{transform_indices = @transform_0, window_bounds = array<i64: 8, 16>}, {transform_indices = @transform_1, window_bounds = array<i64: 8, 16>}, {transform_indices = @transform_2, window_bounds = array<i64: 8, 16>}]} {
    %c0 = arith.constant 0 : index
    %c0_0 = arith.constant 0 : index
    %0 = vector.load %arg1[%c0, %c0_0] : memref<8x16xf32, #tpu.memory_space<vmem>>, vector<8x16xf32>
    %c0_1 = arith.constant 0 : index
    %c0_2 = arith.constant 0 : index
    %1 = vector.load %arg2[%c0_1, %c0_2] : memref<8x16xi8, #tpu.memory_space<vmem>>, vector<8x16xi8>
    %c0_i8 = arith.constant 0 : i8
    %2 = vector.broadcast %c0_i8 : i8 to vector<8x16xi8>
    %3 = arith.cmpi ne, %1, %2 : vector<8x16xi8>
    %cst = arith.constant 0xFF800000 : f32
    %4 = vector.broadcast %cst : f32 to vector<8x16xf32>
    %5 = arith.select %3, %0, %4 : vector<8x16xi1>, vector<8x16xf32>
    %cst_3 = arith.constant dense<0xFF800000> : vector<8xf32>
    %6 = vector.multi_reduction <maximumf>, %5, %cst_3 [1] : vector<8x16xf32> to vector<8xf32>
    %7 = vector.shape_cast %6 : vector<8xf32> to vector<8x1xf32>
    %8 = vector.broadcast %7 : vector<8x1xf32> to vector<8x16xf32>
    %9 = arith.subf %5, %8 : vector<8x16xf32>
    %10 = math.exp %9 : vector<8x16xf32>
    %cst_4 = arith.constant dense<0.000000e+00> : vector<8xf32>
    %11 = vector.multi_reduction <add>, %10, %cst_4 [1] : vector<8x16xf32> to vector<8xf32>
    %12 = vector.shape_cast %11 : vector<8xf32> to vector<8x1xf32>
    %13 = vector.broadcast %12 : vector<8x1xf32> to vector<8x16xf32>
    %14 = arith.divf %10, %13 : vector<8x16xf32>
    %c0_5 = arith.constant 0 : index
    %c0_6 = arith.constant 0 : index
    %15 = vector.load %arg3[%c0_5, %c0_6] : memref<8x16xf32, #tpu.memory_space<vmem>>, vector<8x16xf32>
    tpu.vector_store %arg3[%c0_5, %c0_6], %14 {strides = array<i32>} : memref<8x16xf32, #tpu.memory_space<vmem>>, vector<8x16xf32>,
    return
  }
  func.func @transform_0(%arg0: i32) -> (i32, i32) {
    %c0_i32 = arith.constant 0 : i32
    %c0_i32_0 = arith.constant 0 : i32
    return %arg0, %c0_i32 : i32, i32
  }
  func.func @transform_1(%arg0: i32) -> (i32, i32) {
    %c0_i32 = arith.constant 0 : i32
    %c0_i32_0 = arith.constant 0 : i32
    return %arg0, %c0_i32 : i32, i32
  }
  func.func @transform_2(%arg0: i32) -> (i32, i32) {
    %c0_i32 = arith.constant 0 : i32
    %c0_i32_0 = arith.constant 0 : i32
    return %arg0, %c0_i32 : i32, i32
  }
}

</mosaic_0001>

<llo_original>
// kernel: tpu_custom_call.1
$region0: #{tpu_custom_call.1}
  #allocation0 [shape = 'u32[]', space=smem, size = 0x4, offset = 0x4, fixed_abs, tag = 'smem constant byte address 0x4 - core index']
  #allocation1 [shape = 'u32[144,128]{1,0:T(1,128)}', space=vmem, size = 0x12000, scoped, tag = 'internal scratch']
  %s0 = inlined_call_operand.hbm [shape: f32[8,16], index: 0, kind: input, shape index: {}]
  %s1 = inlined_call_operand.vmem [shape: s8[8,16], index: 1, kind: input, shape index: {}]
  %s2 = inlined_call_operand.hbm [shape: f32[8,16], index: 2, kind: output, shape index: {}]
  %s3 = sld [smem:[#allocation0]]
  $region22: #{tpu_custom_call.1} parent=0
    _
  %s5 = ssub.s32 1, %s3
  %s6 = scalar_select 0, %s5, %s3
  $region1: #{tpu_custom_call.1} parent=0
    #allocation2 [shape = 'u8[4096]{0}', space=vmem, size = 0x1000, scoped, tag = 'input window, operand 0, single buffered']
    #allocation3 [shape = 's32[1]{0}', space=sflag, size = 0x4, scoped, tag = 'scoped memory for tpu_custom_call.1']
    #allocation4 [shape = 's32[1]{0}', space=sflag, size = 0x4, scoped, tag = 'scoped memory for tpu_custom_call.1']
    #allocation5 [shape = 'u8[4096]{0}', space=vmem, size = 0x1000, scoped, tag = 'output window, operand 0, single buffered']
    %7 = vsyncpa [#allocation3], 0
    %8 = vsyncpa [#allocation4], 0
    // Predicated region
    $region2: #{tpu_custom_call.1} parent=1 // pred_check
      _
    $region3: #{tpu_custom_call.1} parent=1 // pred_check_branch
      %10 = sbr.rel (0) target = $region5
    $region4: #{tpu_custom_call.1} parent=1 // pred_region
      %s12 = ssub.s32 128, 128
      %13 = vsyncadd [#allocation3], %s12
      %s15 = sshll.u32 [#allocation2], 4
      %s16 = int_to_ptr.vmem [resolvable:$true] %s15
      %18 = dma.hbm_to_vmem [thread:$0]  %s0, 128, %s16, [#allocation3]
    $region5: #{tpu_custom_call.1} parent=1 // pred_fallthru
      _
    // Predicated region
    $region6: #{tpu_custom_call.1} parent=1 // pred_check
      _
    $region7: #{tpu_custom_call.1} parent=1 // pred_check_branch
      %20 = sbr.rel (0) target = $region9
    $region8: #{tpu_custom_call.1} parent=1 // pred_region
      _
    $region9: #{tpu_custom_call.1} parent=1 // pred_fallthru
      _
    // Predicated region
    $region10: #{tpu_custom_call.1} parent=1 // pred_check
      _
    $region11: #{tpu_custom_call.1} parent=1 // pred_check_branch
      %22 = sbr.rel (0) target = $region13
    $region12: #{tpu_custom_call.1} parent=1 // pred_region
      %23 = dma.done [#allocation3], 128
    $region13: #{tpu_custom_call.1} parent=1 // pred_fallthru
      _
    %v26 = vld [vmem:[#allocation2] sm:$0xff]
    %v27 = vld [vmem:[%s1] sm:$0x3]
    %vm28 = vnez %v27
    %v29 = vsel %vm28, 16843009, 0
    %v30 = vunpack.c.0.s8 %v29
    %vm31 = vcmp.ne.s32.totalorder %v30, 0
    %v32 = vsel %vm31, %v26, -inf
    %vm33 = vcmask 130048
    %v34 = vsel %vm33, %v32, -inf
    %35 = vmax.xlane.f32.xlu0 %v34
    %v36 = vpop.xlane.xlu0 %35
    %v37 = vsub.f32 %v32, %v36
    %v38 = vmul.f32 %v37, 1.442695
    %v39 = vpow.pop %v38
    %v40 = vsel %vm33, %v39, 0.0
    %41 = vadd.xlane.f32.xlu0 %v40
    %v42 = vpop.xlane.xlu0 %41
    %v43 = vrcp.pop %v42
    %v44 = vmul.f32 %v39, %v43
    %45 = vst.msk [vmem:[#allocation5] sm:$0xff] %vm33, %v44
    // Predicated region
    $region14: #{tpu_custom_call.1} parent=1 // pred_check
      _
    $region15: #{tpu_custom_call.1} parent=1 // pred_check_branch
      %47 = sbr.rel (0) target = $region17
    $region16: #{tpu_custom_call.1} parent=1 // pred_region
      %s49 = ssub.s32 128, 128
      %50 = vsyncadd [#allocation4], %s49
      %s52 = sshll.u32 [#allocation5], 4
      %s53 = int_to_ptr.vmem [resolvable:$true] %s52
      %55 = dma.vmem_to_hbm [thread:$0]  %s53, 128, %s2, [#allocation4]
    $region17: #{tpu_custom_call.1} parent=1 // pred_fallthru
      _
    // Predicated region
    $region18: #{tpu_custom_call.1} parent=1 // pred_check
      _
    $region19: #{tpu_custom_call.1} parent=1 // pred_check_branch
      %57 = sbr.rel (0) target = $region21
    $region20: #{tpu_custom_call.1} parent=1 // pred_region
      %58 = dma.done [#allocation4], 128
    $region21: #{tpu_custom_call.1} parent=1 // pred_fallthru
      _
    %59 = vsyncpa [#allocation3], 1
    %60 = vsyncpa [#allocation4], 1

</llo_original>
